<compile_context>
chip_gen: v7x
topology: tpu7x:2x2x1
jax: 0.10.0
libtpu: 0.0.40
codegen_flags: <defaults>
</compile_context>

<pallas_src>
import jax
import jax.numpy as jnp
from jax.experimental import pallas as pl


DIM = 4  # state dimension (dim > 1 path of the module)


def _stable_softplus(x):
    # softplus(x) = max(x, 0) + log(1 + exp(-|x|))   (numerically stable,
    # uses only exp/log/abs/max which lower cleanly in Mosaic).
    return jnp.maximum(x, 0.0) + jnp.log(1.0 + jnp.exp(-jnp.abs(x)))


# ----------------------------- kernel ---------------------------------------

def _proposal_fused_kernel(obs_ref, prev_ref, w0t_ref, wpt_ref, wot_ref,
                           s0v_ref, stv_ref,
                           mean0_ref, means_ref, scale0_ref, scalet_ref):
    """Grid-less kernel: the entire forward in one shot.

    obs_ref    : (T, B, D)     all observations
    prev_ref   : (T, B, P, D)  per-step previous latents (slot 0 is a placeholder)
    w0t_ref    : (D, D)        lin_0.weight^T
    wpt_ref    : (D, D)        lin_t.weight[:, :D]^T  (multiplies previous latents)
    wot_ref    : (D, D)        lin_t.weight[:, D:]^T  (multiplies the repeated obs)
    s0v_ref    : (1, D)        scale_0_vector
    stv_ref    : (1, D)        scale_t_vector
    mean0_ref  : (B, D)        t == 0 loc
    means_ref  : (T, B, P, D)  t  > 0 locs (slot 0 is a by-product)
    scale0_ref : (D, D)        softplus(diag(scale_0_vector))
    scalet_ref : (D, D)        softplus(diag(scale_t_vector))
    """
    d = mean0_ref.shape[-1]

    obs = obs_ref[...].astype(jnp.float32)       # (T, B, D)
    prev = prev_ref[...].astype(jnp.float32)     # (T, B, P, D)
    w0t = w0t_ref[...].astype(jnp.float32)       # (D, D); row k = weights of input k
    wpt = wpt_ref[...].astype(jnp.float32)
    wot = wot_ref[...].astype(jnp.float32)

    # time > 0 :  loc = cat([prev, obs.repeat(P)], -1) @ W_t^T
    #           = prev @ Wp^T  +  obs @ Wo^T   (obs term broadcast over P)
    # time == 0:  loc = obs[0] @ W_0^T
    # D == 4 -> unrolled VPU broadcast-FMAs (no padded MXU dot).
    part_prev = jnp.zeros(prev.shape, jnp.float32)          # (T, B, P, D)
    part_obs = jnp.zeros(obs.shape, jnp.float32)            # (T, B, D)
    obs0 = obs[0]                                            # (B, D)
    m0 = jnp.zeros(obs0.shape, jnp.float32)                  # (B, D)
    for k in range(d):                                       # static unroll (d == 4)
        part_prev = part_prev + prev[..., k:k + 1] * wpt[k:k + 1, :]
        part_obs = part_obs + obs[..., k:k + 1] * wot[k:k + 1, :]
        m0 = m0 + obs0[:, k:k + 1] * w0t[k:k + 1, :]

    means_ref[...] = (part_prev + part_obs[:, :, None, :]).astype(means_ref.dtype)
    mean0_ref[...] = m0.astype(mean0_ref.dtype)

    # scale matrices: softplus applied elementwise to diag(v)
    # (diagonal = softplus(v_i), off-diagonal = softplus(0) = log 2,
    #  matching torch.nn.functional.softplus(torch.diag(v))).
    row = jax.lax.broadcasted_iota(jnp.int32, (d, d), 0)
    col = jax.lax.broadcasted_iota(jnp.int32, (d, d), 1)
    diag_mask = row == col
    s0 = jnp.where(diag_mask, s0v_ref[...].astype(jnp.float32), 0.0)   # (1,D) -> (D,D)
    st = jnp.where(diag_mask, stv_ref[...].astype(jnp.float32), 0.0)
    scale0_ref[...] = _stable_softplus(s0).astype(scale0_ref.dtype)
    scalet_ref[...] = _stable_softplus(st).astype(scalet_ref.dtype)


# ----------------------------- wrapper ---------------------------------------

def proposal_forward_fused(observations, previous_latents, w0, wt,
                           scale_0_vector, scale_t_vector):
    """Fused forward over all T timesteps in a single pallas_call.

    observations     : (T, B, D)
    previous_latents : (T, B, P, D)   per-step previous latents (slot 0 unused
                       by the module at t == 0; kept for uniform layout)
    w0               : (D, D)   lin_0.weight  (PyTorch layout: out, in)
    wt               : (D, 2D)  lin_t.weight  (out, in)

    Returns (mean0 (B,D), means_t (T,B,P,D), scale_0 (D,D), scale_t (D,D)).
    means_t[0] is a by-product of the uniform per-step compute; the module's
    t == 0 loc is `mean0`.
    """
    T, B, D = observations.shape
    assert previous_latents.shape[0] == T and previous_latents.shape[1] == B
    P = previous_latents.shape[2]

    # perf: layout plumbing done once at trace time — pre-transpose & split the
    # Linear weights, reshape scale vectors to 2-D for the kernel.
    w0_t = w0.T                       # (in, out)
    w_prev_t = wt[:, :D].T            # (D, D)  multiplies previous latents
    w_obs_t = wt[:, D:].T             # (D, D)  multiplies the repeated observation
    s0v = scale_0_vector.reshape(1, D)
    stv = scale_t_vector.reshape(1, D)

    mean0, means_t, scale_0, scale_t = pl.pallas_call(
        _proposal_fused_kernel,
        out_shape=(
            jax.ShapeDtypeStruct((B, D), observations.dtype),
            jax.ShapeDtypeStruct((T, B, P, D), observations.dtype),
            jax.ShapeDtypeStruct((D, D), scale_0_vector.dtype),
            jax.ShapeDtypeStruct((D, D), scale_t_vector.dtype),
        ),
        # grid-less: every operand/result is a single whole-array VMEM block
        # (total footprint ~4 KiB), so no BlockSpec tiling is needed.
    )(observations, previous_latents, w0_t, w_prev_t, w_obs_t, s0v, stv)

    # TODO(synk): if T*B*P grows large, reintroduce a grid over T (or T*B) and
    # switch means_t to a lane-dense (..., >=128) writeback layout.
    return mean0, means_t, scale_0, scale_t


# ----------------------------- reference -------------------------------------

def _ref_forward(observations, previous_latents, w0, wt,
                 scale_0_vector, scale_t_vector):
    T, B, D = observations.shape
    P = previous_latents.shape[2]
    mean0 = observations[0] @ w0.T
    obs_rep = jnp.broadcast_to(observations[:, :, None, :], (T, B, P, D))
    cat = jnp.concatenate([previous_latents, obs_rep], axis=-1)        # (T,B,P,2D)
    means_t = jnp.einsum('tbpk,dk->tbpd', cat, wt)
    scale_0 = jax.nn.softplus(jnp.diag(scale_0_vector))
    scale_t = jax.nn.softplus(jnp.diag(scale_t_vector))
    return mean0, means_t, scale_0, scale_t


# ----------------------------- main -------------------------------------------

if __name__ == "__main__":
    B, P, D, T = 2, 8, DIM, 8
    key = jax.random.PRNGKey(0)
    k_s0, k_st, k_w0, k_wt, k_obs, k_prev = jax.random.split(key, 6)

    # Parameters (Linear init ~ U(-1/sqrt(fan_in), 1/sqrt(fan_in)))
    scale_0_vector = jax.random.normal(k_s0, (D,), jnp.float32) * 0.5
    scale_t_vector = jax.random.normal(k_st, (D,), jnp.float32) * 0.5
    w0 = jax.random.uniform(k_w0, (D, D), jnp.float32,
                            minval=-1.0 / jnp.sqrt(D), maxval=1.0 / jnp.sqrt(D))
    wt = jax.random.uniform(k_wt, (D, 2 * D), jnp.float32,
                            minval=-1.0 / jnp.sqrt(2 * D), maxval=1.0 / jnp.sqrt(2 * D))

    # Inputs
    observations = jax.random.normal(k_obs, (T, B, D), jnp.float32)
    previous_latents = jax.random.normal(k_prev, (T, B, P, D), jnp.float32)

    mean0, means_t, scale0, scalet = proposal_forward_fused(
        observations, previous_latents, w0, wt, scale_0_vector, scale_t_vector)
    jax.block_until_ready((mean0, means_t, scale0, scalet))

    r_mean0, r_means_t, r_scale0, r_scalet = _ref_forward(
        observations, previous_latents, w0, wt, scale_0_vector, scale_t_vector)

    assert jnp.allclose(mean0, r_mean0, atol=1e-5, rtol=1e-5)
    assert jnp.allclose(means_t, r_means_t, atol=1e-5, rtol=1e-5)  # slot 0 = by-product, same formula
    assert jnp.allclose(scale0, r_scale0, atol=1e-5, rtol=1e-5)
    assert jnp.allclose(scalet, r_scalet, atol=1e-5, rtol=1e-5)

    # TODO(synk): distribution-object construction (torch.distributions +
    # aesmc.state.set_batch_shape_mode) has no tensor compute; (loc, scale) returned.
    print("KERNEL_OK")
</pallas_src>

<mosaic_0001>
module attributes {stable_mosaic.version = 11 : i64} {
  func.func @_proposal_fused_kernel(%arg0: memref<8x2x4xf32, #tpu.memory_space<vmem>>, %arg1: memref<8x2x8x4xf32, #tpu.memory_space<vmem>>, %arg2: memref<4x4xf32, #tpu.memory_space<vmem>>, %arg3: memref<4x4xf32, #tpu.memory_space<vmem>>, %arg4: memref<4x4xf32, #tpu.memory_space<vmem>>, %arg5: memref<1x4xf32, #tpu.memory_space<vmem>>, %arg6: memref<1x4xf32, #tpu.memory_space<vmem>>, %arg7: memref<2x4xf32, #tpu.memory_space<vmem>>, %arg8: memref<8x2x8x4xf32, #tpu.memory_space<vmem>>, %arg9: memref<4x4xf32, #tpu.memory_space<vmem>>, %arg10: memref<4x4xf32, #tpu.memory_space<vmem>>) attributes {dimension_semantics = [], scalar_prefetch = 0 : i64, scratch_operands = 0 : i64, tpu.core_type = #tpu.core_type<tc>} {
    %c0 = arith.constant 0 : index
    %c0_0 = arith.constant 0 : index
    %c0_1 = arith.constant 0 : index
    %0 = vector.load %arg0[%c0, %c0_0, %c0_1] : memref<8x2x4xf32, #tpu.memory_space<vmem>>, vector<8x2x4xf32>
    %c0_2 = arith.constant 0 : index
    %c0_3 = arith.constant 0 : index
    %c0_4 = arith.constant 0 : index
    %c0_5 = arith.constant 0 : index
    %1 = vector.load %arg1[%c0_2, %c0_3, %c0_4, %c0_5] : memref<8x2x8x4xf32, #tpu.memory_space<vmem>>, vector<8x2x8x4xf32>
    %c0_6 = arith.constant 0 : index
    %c0_7 = arith.constant 0 : index
    %2 = vector.load %arg2[%c0_6, %c0_7] : memref<4x4xf32, #tpu.memory_space<vmem>>, vector<4x4xf32>
    %c0_8 = arith.constant 0 : index
    %c0_9 = arith.constant 0 : index
    %3 = vector.load %arg3[%c0_8, %c0_9] : memref<4x4xf32, #tpu.memory_space<vmem>>, vector<4x4xf32>
    %c0_10 = arith.constant 0 : index
    %c0_11 = arith.constant 0 : index
    %4 = vector.load %arg4[%c0_10, %c0_11] : memref<4x4xf32, #tpu.memory_space<vmem>>, vector<4x4xf32>
    %cst = arith.constant 0.000000e+00 : f32
    %5 = vector.broadcast %cst : f32 to vector<8x2x8x4xf32>
    %cst_12 = arith.constant 0.000000e+00 : f32
    %6 = vector.broadcast %cst_12 : f32 to vector<8x2x4xf32>
    %7 = vector.extract_strided_slice %0 {offsets = [0, 0, 0], sizes = [1, 2, 4], strides = [1, 1, 1]} : vector<8x2x4xf32> to vector<1x2x4xf32>
    %8 = vector.shape_cast %7 : vector<1x2x4xf32> to vector<2x4xf32>
    %cst_13 = arith.constant 0.000000e+00 : f32
    %9 = vector.broadcast %cst_13 : f32 to vector<2x4xf32>
    %10 = vector.extract_strided_slice %1 {offsets = [0, 0, 0, 0], sizes = [8, 2, 8, 1], strides = [1, 1, 1, 1]} : vector<8x2x8x4xf32> to vector<8x2x8x1xf32>
    %11 = vector.extract_strided_slice %3 {offsets = [0, 0], sizes = [1, 4], strides = [1, 1]} : vector<4x4xf32> to vector<1x4xf32>
    %12 = vector.shape_cast %11 : vector<1x4xf32> to vector<1x1x1x4xf32>
    %13 = vector.broadcast %10 : vector<8x2x8x1xf32> to vector<8x2x8x4xf32>
    %14 = vector.broadcast %12 : vector<1x1x1x4xf32> to vector<8x2x8x4xf32>
    %15 = arith.mulf %13, %14 : vector<8x2x8x4xf32>
    %16 = arith.addf %5, %15 : vector<8x2x8x4xf32>
    %17 = vector.extract_strided_slice %0 {offsets = [0, 0, 0], sizes = [8, 2, 1], strides = [1, 1, 1]} : vector<8x2x4xf32> to vector<8x2x1xf32>
    %18 = vector.extract_strided_slice %4 {offsets = [0, 0], sizes = [1, 4], strides = [1, 1]} : vector<4x4xf32> to vector<1x4xf32>
    %19 = vector.shape_cast %18 : vector<1x4xf32> to vector<1x1x4xf32>
    %20 = vector.broadcast %17 : vector<8x2x1xf32> to vector<8x2x4xf32>
    %21 = vector.broadcast %19 : vector<1x1x4xf32> to vector<8x2x4xf32>
    %22 = arith.mulf %20, %21 : vector<8x2x4xf32>
    %23 = arith.addf %6, %22 : vector<8x2x4xf32>
    %24 = vector.extract_strided_slice %8 {offsets = [0, 0], sizes = [2, 1], strides = [1, 1]} : vector<2x4xf32> to vector<2x1xf32>
    %25 = vector.extract_strided_slice %2 {offsets = [0, 0], sizes = [1, 4], strides = [1, 1]} : vector<4x4xf32> to vector<1x4xf32>
    %26 = vector.broadcast %24 : vector<2x1xf32> to vector<2x4xf32>
    %27 = vector.broadcast %25 : vector<1x4xf32> to vector<2x4xf32>
    %28 = arith.mulf %26, %27 : vector<2x4xf32>
    %29 = arith.addf %9, %28 : vector<2x4xf32>
    %30 = vector.extract_strided_slice %1 {offsets = [0, 0, 0, 1], sizes = [8, 2, 8, 1], strides = [1, 1, 1, 1]} : vector<8x2x8x4xf32> to vector<8x2x8x1xf32>
    %31 = vector.extract_strided_slice %3 {offsets = [1, 0], sizes = [1, 4], strides = [1, 1]} : vector<4x4xf32> to vector<1x4xf32>
    %32 = vector.shape_cast %31 : vector<1x4xf32> to vector<1x1x1x4xf32>
    %33 = vector.broadcast %30 : vector<8x2x8x1xf32> to vector<8x2x8x4xf32>
    %34 = vector.broadcast %32 : vector<1x1x1x4xf32> to vector<8x2x8x4xf32>
    %35 = arith.mulf %33, %34 : vector<8x2x8x4xf32>
    %36 = arith.addf %16, %35 : vector<8x2x8x4xf32>
    %37 = vector.extract_strided_slice %0 {offsets = [0, 0, 1], sizes = [8, 2, 1], strides = [1, 1, 1]} : vector<8x2x4xf32> to vector<8x2x1xf32>
    %38 = vector.extract_strided_slice %4 {offsets = [1, 0], sizes = [1, 4], strides = [1, 1]} : vector<4x4xf32> to vector<1x4xf32>
    %39 = vector.shape_cast %38 : vector<1x4xf32> to vector<1x1x4xf32>
    %40 = vector.broadcast %37 : vector<8x2x1xf32> to vector<8x2x4xf32>
    %41 = vector.broadcast %39 : vector<1x1x4xf32> to vector<8x2x4xf32>
    %42 = arith.mulf %40, %41 : vector<8x2x4xf32>
    %43 = arith.addf %23, %42 : vector<8x2x4xf32>
    %44 = vector.extract_strided_slice %8 {offsets = [0, 1], sizes = [2, 1], strides = [1, 1]} : vector<2x4xf32> to vector<2x1xf32>
    %45 = vector.extract_strided_slice %2 {offsets = [1, 0], sizes = [1, 4], strides = [1, 1]} : vector<4x4xf32> to vector<1x4xf32>
    %46 = vector.broadcast %44 : vector<2x1xf32> to vector<2x4xf32>
    %47 = vector.broadcast %45 : vector<1x4xf32> to vector<2x4xf32>
    %48 = arith.mulf %46, %47 : vector<2x4xf32>
    %49 = arith.addf %29, %48 : vector<2x4xf32>
    %50 = vector.extract_strided_slice %1 {offsets = [0, 0, 0, 2], sizes = [8, 2, 8, 1], strides = [1, 1, 1, 1]} : vector<8x2x8x4xf32> to vector<8x2x8x1xf32>
    %51 = vector.extract_strided_slice %3 {offsets = [2, 0], sizes = [1, 4], strides = [1, 1]} : vector<4x4xf32> to vector<1x4xf32>
    %52 = vector.shape_cast %51 : vector<1x4xf32> to vector<1x1x1x4xf32>
    %53 = vector.broadcast %50 : vector<8x2x8x1xf32> to vector<8x2x8x4xf32>
    %54 = vector.broadcast %52 : vector<1x1x1x4xf32> to vector<8x2x8x4xf32>
    %55 = arith.mulf %53, %54 : vector<8x2x8x4xf32>
    %56 = arith.addf %36, %55 : vector<8x2x8x4xf32>
    %57 = vector.extract_strided_slice %0 {offsets = [0, 0, 2], sizes = [8, 2, 1], strides = [1, 1, 1]} : vector<8x2x4xf32> to vector<8x2x1xf32>
    %58 = vector.extract_strided_slice %4 {offsets = [2, 0], sizes = [1, 4], strides = [1, 1]} : vector<4x4xf32> to vector<1x4xf32>
    %59 = vector.shape_cast %58 : vector<1x4xf32> to vector<1x1x4xf32>
    %60 = vector.broadcast %57 : vector<8x2x1xf32> to vector<8x2x4xf32>
    %61 = vector.broadcast %59 : vector<1x1x4xf32> to vector<8x2x4xf32>
    %62 = arith.mulf %60, %61 : vector<8x2x4xf32>
    %63 = arith.addf %43, %62 : vector<8x2x4xf32>
    %64 = vector.extract_strided_slice %8 {offsets = [0, 2], sizes = [2, 1], strides = [1, 1]} : vector<2x4xf32> to vector<2x1xf32>
    %65 = vector.extract_strided_slice %2 {offsets = [2, 0], sizes = [1, 4], strides = [1, 1]} : vector<4x4xf32> to vector<1x4xf32>
    %66 = vector.broadcast %64 : vector<2x1xf32> to vector<2x4xf32>
    %67 = vector.broadcast %65 : vector<1x4xf32> to vector<2x4xf32>
    %68 = arith.mulf %66, %67 : vector<2x4xf32>
    %69 = arith.addf %49, %68 : vector<2x4xf32>
    %70 = vector.extract_strided_slice %1 {offsets = [0, 0, 0, 3], sizes = [8, 2, 8, 1], strides = [1, 1, 1, 1]} : vector<8x2x8x4xf32> to vector<8x2x8x1xf32>
    %71 = vector.extract_strided_slice %3 {offsets = [3, 0], sizes = [1, 4], strides = [1, 1]} : vector<4x4xf32> to vector<1x4xf32>
    %72 = vector.shape_cast %71 : vector<1x4xf32> to vector<1x1x1x4xf32>
    %73 = vector.broadcast %70 : vector<8x2x8x1xf32> to vector<8x2x8x4xf32>
    %74 = vector.broadcast %72 : vector<1x1x1x4xf32> to vector<8x2x8x4xf32>
    %75 = arith.mulf %73, %74 : vector<8x2x8x4xf32>
    %76 = arith.addf %56, %75 : vector<8x2x8x4xf32>
    %77 = vector.extract_strided_slice %0 {offsets = [0, 0, 3], sizes = [8, 2, 1], strides = [1, 1, 1]} : vector<8x2x4xf32> to vector<8x2x1xf32>
    %78 = vector.extract_strided_slice %4 {offsets = [3, 0], sizes = [1, 4], strides = [1, 1]} : vector<4x4xf32> to vector<1x4xf32>
    %79 = vector.shape_cast %78 : vector<1x4xf32> to vector<1x1x4xf32>
    %80 = vector.broadcast %77 : vector<8x2x1xf32> to vector<8x2x4xf32>
    %81 = vector.broadcast %79 : vector<1x1x4xf32> to vector<8x2x4xf32>
    %82 = arith.mulf %80, %81 : vector<8x2x4xf32>
    %83 = arith.addf %63, %82 : vector<8x2x4xf32>
    %84 = vector.extract_strided_slice %8 {offsets = [0, 3], sizes = [2, 1], strides = [1, 1]} : vector<2x4xf32> to vector<2x1xf32>
    %85 = vector.extract_strided_slice %2 {offsets = [3, 0], sizes = [1, 4], strides = [1, 1]} : vector<4x4xf32> to vector<1x4xf32>
    %86 = vector.broadcast %84 : vector<2x1xf32> to vector<2x4xf32>
    %87 = vector.broadcast %85 : vector<1x4xf32> to vector<2x4xf32>
    %88 = arith.mulf %86, %87 : vector<2x4xf32>
    %89 = arith.addf %69, %88 : vector<2x4xf32>
    %90 = vector.shape_cast %83 : vector<8x2x4xf32> to vector<8x2x1x4xf32>
    %91 = vector.broadcast %90 : vector<8x2x1x4xf32> to vector<8x2x8x4xf32>
    %92 = arith.addf %76, %91 : vector<8x2x8x4xf32>
    %c0_14 = arith.constant 0 : index
    %c0_15 = arith.constant 0 : index
    %c0_16 = arith.constant 0 : index
    %c0_17 = arith.constant 0 : index
    %93 = vector.load %arg8[%c0_14, %c0_15, %c0_16, %c0_17] : memref<8x2x8x4xf32, #tpu.memory_space<vmem>>, vector<8x2x8x4xf32>
    tpu.vector_store %arg8[%c0_14, %c0_15, %c0_16, %c0_17], %92 {strides = array<i32>} : memref<8x2x8x4xf32, #tpu.memory_space<vmem>>, vector<8x2x8x4xf32>,
    %c0_18 = arith.constant 0 : index
    %c0_19 = arith.constant 0 : index
    %94 = vector.load %arg7[%c0_18, %c0_19] : memref<2x4xf32, #tpu.memory_space<vmem>>, vector<2x4xf32>
    tpu.vector_store %arg7[%c0_18, %c0_19], %89 {strides = array<i32>} : memref<2x4xf32, #tpu.memory_space<vmem>>, vector<2x4xf32>,
    %95 = tpu.iota {dimensions = array<i32: 0>} : vector<4x4xi32>
    %96 = tpu.iota {dimensions = array<i32: 1>} : vector<4x4xi32>
    %97 = arith.cmpi eq, %95, %96 : vector<4x4xi32>
    %c0_20 = arith.constant 0 : index
    %c0_21 = arith.constant 0 : index
    %98 = vector.load %arg5[%c0_20, %c0_21] : memref<1x4xf32, #tpu.memory_space<vmem>>, vector<1x4xf32>
    %cst_22 = arith.constant 0.000000e+00 : f32
    %99 = vector.shape_cast %98 : vector<1x4xf32> to vector<1x4xf32>
    %100 = vector.broadcast %99 : vector<1x4xf32> to vector<4x4xf32>
    %101 = vector.broadcast %cst_22 : f32 to vector<4x4xf32>
    %102 = arith.select %97, %100, %101 : vector<4x4xi1>, vector<4x4xf32>
    %c0_23 = arith.constant 0 : index
    %c0_24 = arith.constant 0 : index
    %103 = vector.load %arg6[%c0_23, %c0_24] : memref<1x4xf32, #tpu.memory_space<vmem>>, vector<1x4xf32>
    %cst_25 = arith.constant 0.000000e+00 : f32
    %104 = vector.shape_cast %103 : vector<1x4xf32> to vector<1x4xf32>
    %105 = vector.broadcast %104 : vector<1x4xf32> to vector<4x4xf32>
    %106 = vector.broadcast %cst_25 : f32 to vector<4x4xf32>
    %107 = arith.select %97, %105, %106 : vector<4x4xi1>, vector<4x4xf32>
    %cst_26 = arith.constant 0.000000e+00 : f32
    %108 = vector.broadcast %cst_26 : f32 to vector<4x4xf32>
    %109 = arith.maximumf %102, %108 : vector<4x4xf32>
    %110 = math.absf %102 : vector<4x4xf32>
    %cst_27 = arith.constant 0.000000e+00 : f32
    %111 = vector.broadcast %cst_27 : f32 to vector<4x4xf32>
    %112 = arith.subf %111, %110 : vector<4x4xf32>
    %113 = math.exp %112 : vector<4x4xf32>
    %cst_28 = arith.constant 1.000000e+00 : f32
    %114 = vector.broadcast %cst_28 : f32 to vector<4x4xf32>
    %115 = arith.addf %114, %113 : vector<4x4xf32>
    %116 = math.log %115 : vector<4x4xf32>
    %117 = arith.addf %109, %116 : vector<4x4xf32>
    %c0_29 = arith.constant 0 : index
    %c0_30 = arith.constant 0 : index
    %118 = vector.load %arg9[%c0_29, %c0_30] : memref<4x4xf32, #tpu.memory_space<vmem>>, vector<4x4xf32>
    tpu.vector_store %arg9[%c0_29, %c0_30], %117 {strides = array<i32>} : memref<4x4xf32, #tpu.memory_space<vmem>>, vector<4x4xf32>,
    %cst_31 = arith.constant 0.000000e+00 : f32
    %119 = vector.broadcast %cst_31 : f32 to vector<4x4xf32>
    %120 = arith.maximumf %107, %119 : vector<4x4xf32>
    %121 = math.absf %107 : vector<4x4xf32>
    %cst_32 = arith.constant 0.000000e+00 : f32
    %122 = vector.broadcast %cst_32 : f32 to vector<4x4xf32>
    %123 = arith.subf %122, %121 : vector<4x4xf32>
    %124 = math.exp %123 : vector<4x4xf32>
    %cst_33 = arith.constant 1.000000e+00 : f32
    %125 = vector.broadcast %cst_33 : f32 to vector<4x4xf32>
    %126 = arith.addf %125, %124 : vector<4x4xf32>
    %127 = math.log %126 : vector<4x4xf32>
    %128 = arith.addf %120, %127 : vector<4x4xf32>
    %c0_34 = arith.constant 0 : index
    %c0_35 = arith.constant 0 : index
    %129 = vector.load %arg10[%c0_34, %c0_35] : memref<4x4xf32, #tpu.memory_space<vmem>>, vector<4x4xf32>
    tpu.vector_store %arg10[%c0_34, %c0_35], %128 {strides = array<i32>} : memref<4x4xf32, #tpu.memory_space<vmem>>, vector<4x4xf32>,
    return
  }
}

</mosaic_0001>

<llo_original>
// kernel: tpu_custom_call.1
$region0: #{tpu_custom_call.1}
  #allocation0 [shape = 'u32[]', space=smem, size = 0x4, offset = 0x4, fixed_abs, tag = 'smem constant byte address 0x4 - core index']
  #allocation1 [shape = 'u32[144,128]{1,0:T(1,128)}', space=vmem, size = 0x12000, scoped, tag = 'internal scratch']
  %s0 = inlined_call_operand.vmem [shape: f32[8,2,4], index: 0, kind: input, shape index: {}]
  %s1 = inlined_call_operand.vmem [shape: f32[8,2,8,4], index: 1, kind: input, shape index: {}]
  %s2 = inlined_call_operand.vmem [shape: f32[4,4], index: 2, kind: input, shape index: {}]
  %s3 = inlined_call_operand.vmem [shape: f32[4,4], index: 3, kind: input, shape index: {}]
  %s4 = inlined_call_operand.vmem [shape: f32[4,4], index: 4, kind: input, shape index: {}]
  %s5 = inlined_call_operand.vmem [shape: f32[1,4], index: 5, kind: input, shape index: {}]
  %s6 = inlined_call_operand.vmem [shape: f32[1,4], index: 6, kind: input, shape index: {}]
  %s7 = inlined_call_operand.hbm [shape: f32[2,4], index: 7, kind: output, shape index: {0}]
  %s8 = inlined_call_operand.vmem [shape: f32[8,2,8,4], index: 8, kind: output, shape index: {1}]
  %s9 = inlined_call_operand.hbm [shape: f32[4,4], index: 9, kind: output, shape index: {2}]
  %s10 = inlined_call_operand.hbm [shape: f32[4,4], index: 10, kind: output, shape index: {3}]
  %11 = xla_tuple %s7, %s8, %s9, %s10
  %s12 = sld [smem:[#allocation0]]
  $region62: #{tpu_custom_call.1} parent=0
    _
  %s14 = ssub.s32 1, %s12
  %s15 = scalar_select 0, %s14, %s12
  $region1: #{tpu_custom_call.1} parent=0
    #allocation2 [shape = 'u8[1024]{0}', space=vmem, size = 0x400, scoped, tag = 'output window, operand 0, single buffered']
    #allocation3 [shape = 's32[1]{0}', space=sflag, size = 0x4, scoped, tag = 'scoped memory for tpu_custom_call.1']
    #allocation4 [shape = 'u8[2048]{0}', space=vmem, size = 0x800, scoped, tag = 'output window, operand 2, single buffered']
    #allocation5 [shape = 's32[1]{0}', space=sflag, size = 0x4, scoped, tag = 'scoped memory for tpu_custom_call.1']
    #allocation6 [shape = 'u8[2048]{0}', space=vmem, size = 0x800, scoped, tag = 'output window, operand 3, single buffered']
    %16 = vsyncpa [#allocation3], 0
    %17 = vsyncpa [#allocation5], 0
    // Predicated region
    $region2: #{tpu_custom_call.1} parent=1 // pred_check
      _
    $region3: #{tpu_custom_call.1} parent=1 // pred_check_branch
      %19 = sbr.rel (0) target = $region5
    $region4: #{tpu_custom_call.1} parent=1 // pred_region
      _
    $region5: #{tpu_custom_call.1} parent=1 // pred_fallthru
      _
    // Predicated region
    $region6: #{tpu_custom_call.1} parent=1 // pred_check
      _
    $region7: #{tpu_custom_call.1} parent=1 // pred_check_branch
      %21 = sbr.rel (0) target = $region9
    $region8: #{tpu_custom_call.1} parent=1 // pred_region
      _
    $region9: #{tpu_custom_call.1} parent=1 // pred_fallthru
      _
    // Predicated region
    $region10: #{tpu_custom_call.1} parent=1 // pred_check
      _
    $region11: #{tpu_custom_call.1} parent=1 // pred_check_branch
      %23 = sbr.rel (0) target = $region13
    $region12: #{tpu_custom_call.1} parent=1 // pred_region
      _
    $region13: #{tpu_custom_call.1} parent=1 // pred_fallthru
      _
    // Predicated region
    $region14: #{tpu_custom_call.1} parent=1 // pred_check
      _
    $region15: #{tpu_custom_call.1} parent=1 // pred_check_branch
      %25 = sbr.rel (0) target = $region17
    $region16: #{tpu_custom_call.1} parent=1 // pred_region
      _
    $region17: #{tpu_custom_call.1} parent=1 // pred_fallthru
      _
    // Predicated region
    $region18: #{tpu_custom_call.1} parent=1 // pred_check
      _
    $region19: #{tpu_custom_call.1} parent=1 // pred_check_branch
      %27 = sbr.rel (0) target = $region21
    $region20: #{tpu_custom_call.1} parent=1 // pred_region
      _
    $region21: #{tpu_custom_call.1} parent=1 // pred_fallthru
      _
    // Predicated region
    $region22: #{tpu_custom_call.1} parent=1 // pred_check
      _
    $region23: #{tpu_custom_call.1} parent=1 // pred_check_branch
      %29 = sbr.rel (0) target = $region25
    $region24: #{tpu_custom_call.1} parent=1 // pred_region
      _
    $region25: #{tpu_custom_call.1} parent=1 // pred_fallthru
      _
    // Predicated region
    $region26: #{tpu_custom_call.1} parent=1 // pred_check
      _
    $region27: #{tpu_custom_call.1} parent=1 // pred_check_branch
      %31 = sbr.rel (0) target = $region29
    $region28: #{tpu_custom_call.1} parent=1 // pred_region
      _
    $region29: #{tpu_custom_call.1} parent=1 // pred_fallthru
      _
    %v32 = vld [vmem:[%s0] sm:$0x3]
    %v33 = vld [vmem:[%s0 + $0x2] sm:$0x3]
    %v34 = vld [vmem:[%s0 + $0x4] sm:$0x3]
    %v35 = vld [vmem:[%s0 + $0x6] sm:$0x3]
    %v36 = vld [vmem:[%s0 + $0x8] sm:$0x3]
    %v37 = vld [vmem:[%s0 + $0xa] sm:$0x3]
    %v38 = vld [vmem:[%s0 + $0xc] sm:$0x3]
    %v39 = vld [vmem:[%s0 + $0xe] sm:$0x3]
    %v40 = vld [vmem:[%s1] sm:$0xff]
    %v41 = vld [vmem:[%s1 + $0x8] sm:$0xff]
    %v42 = vld [vmem:[%s1 + $0x10] sm:$0xff]
    %v43 = vld [vmem:[%s1 + $0x18] sm:$0xff]
    %v44 = vld [vmem:[%s1 + $0x20] sm:$0xff]
    %v45 = vld [vmem:[%s1 + $0x28] sm:$0xff]
    %v46 = vld [vmem:[%s1 + $0x30] sm:$0xff]
    %v47 = vld [vmem:[%s1 + $0x38] sm:$0xff]
    %v48 = vld [vmem:[%s1 + $0x40] sm:$0xff]
    %v49 = vld [vmem:[%s1 + $0x48] sm:$0xff]
    %v50 = vld [vmem:[%s1 + $0x50] sm:$0xff]
    %v51 = vld [vmem:[%s1 + $0x58] sm:$0xff]
    %v52 = vld [vmem:[%s1 + $0x60] sm:$0xff]
    %v53 = vld [vmem:[%s1 + $0x68] sm:$0xff]
    %v54 = vld [vmem:[%s1 + $0x70] sm:$0xff]
    %v55 = vld [vmem:[%s1 + $0x78] sm:$0xff]
    %v56 = vld [vmem:[%s2] sm:$0xf]
    %v57 = vld [vmem:[%s3] sm:$0xf]
    %v58 = vld [vmem:[%s4] sm:$0xf]
    %60 = vset.pattern.permute.xlu0 0
    %61 = vperm.xlu0 %60, %v40
    %v62 = vpop.permute.xlu0 %61
    %65 = vset.pattern.permute.xlu0 0
    %66 = vperm.xlu0 %65, %v41
    %v67 = vpop.permute.xlu0 %66
    %70 = vset.pattern.permute.xlu0 0
    %71 = vperm.xlu0 %70, %v42
    %v72 = vpop.permute.xlu0 %71
    %75 = vset.pattern.permute.xlu0 0
    %76 = vperm.xlu0 %75, %v43
    %v77 = vpop.permute.xlu0 %76
    %80 = vset.pattern.permute.xlu0 0
    %81 = vperm.xlu0 %80, %v44
    %v82 = vpop.permute.xlu0 %81
    %85 = vset.pattern.permute.xlu0 0
    %86 = vperm.xlu0 %85, %v45
    %v87 = vpop.permute.xlu0 %86
    %90 = vset.pattern.permute.xlu0 0
    %91 = vperm.xlu0 %90, %v46
    %v92 = vpop.permute.xlu0 %91
    %95 = vset.pattern.permute.xlu0 0
    %96 = vperm.xlu0 %95, %v47
    %v97 = vpop.permute.xlu0 %96
    %100 = vset.pattern.permute.xlu0 0
    %101 = vperm.xlu0 %100, %v48
    %v102 = vpop.permute.xlu0 %101
    %105 = vset.pattern.permute.xlu0 0
    %106 = vperm.xlu0 %105, %v49
    %v107 = vpop.permute.xlu0 %106
    %110 = vset.pattern.permute.xlu0 0
    %111 = vperm.xlu0 %110, %v50
    %v112 = vpop.permute.xlu0 %111
    %115 = vset.pattern.permute.xlu0 0
    %116 = vperm.xlu0 %115, %v51
    %v117 = vpop.permute.xlu0 %116
    %120 = vset.pattern.permute.xlu0 0
    %121 = vperm.xlu0 %120, %v52
    %v122 = vpop.permute.xlu0 %121
    %125 = vset.pattern.permute.xlu0 0
    %126 = vperm.xlu0 %125, %v53
    %v127 = vpop.permute.xlu0 %126
    %130 = vset.pattern.permute.xlu0 0
    %131 = vperm.xlu0 %130, %v54
    %v132 = vpop.permute.xlu0 %131
    %135 = vset.pattern.permute.xlu0 0
    %136 = vperm.xlu0 %135, %v55
    %v137 = vpop.permute.xlu0 %136
    %v139 = vlaneseq
    %v140 = vshrl.u32 %v139, 7
    %v141 = vsub.s32 0, %v140
    %v142 = vrot.slane %v57, %v141
    %v143 = vmul.f32 %v62, %v142
    %v144 = vmul.f32 %v67, %v142
    %v145 = vmul.f32 %v72, %v142
    %v146 = vmul.f32 %v77, %v142
    %v147 = vmul.f32 %v82, %v142
    %v148 = vmul.f32 %v87, %v142
    %v149 = vmul.f32 %v92, %v142
    %v150 = vmul.f32 %v97, %v142
    %v151 = vmul.f32 %v102, %v142
    %v152 = vmul.f32 %v107, %v142
    %v153 = vmul.f32 %v112, %v142
    %v154 = vmul.f32 %v117, %v142
    %v155 = vmul.f32 %v122, %v142
    %v156 = vmul.f32 %v127, %v142
    %v157 = vmul.f32 %v132, %v142
    %v158 = vmul.f32 %v137, %v142
    %v159 = vadd.f32 %v143, 0.0
    %v160 = vadd.f32 %v144, 0.0
    %v161 = vadd.f32 %v145, 0.0
    %v162 = vadd.f32 %v146, 0.0
    %v163 = vadd.f32 %v147, 0.0
    %v164 = vadd.f32 %v148, 0.0
    %v165 = vadd.f32 %v149, 0.0
    %v166 = vadd.f32 %v150, 0.0
    %v167 = vadd.f32 %v151, 0.0
    %v168 = vadd.f32 %v152, 0.0
    %v169 = vadd.f32 %v153, 0.0
    %v170 = vadd.f32 %v154, 0.0
    %v171 = vadd.f32 %v155, 0.0
    %v172 = vadd.f32 %v156, 0.0
    %v173 = vadd.f32 %v157, 0.0
    %v174 = vadd.f32 %v158, 0.0
    %176 = vset.pattern.permute.xlu0 0
    %177 = vperm.xlu0 %176, %v32
    %v178 = vpop.permute.xlu0 %177
    %181 = vset.pattern.permute.xlu0 0
    %182 = vperm.xlu0 %181, %v33
    %v183 = vpop.permute.xlu0 %182
    %186 = vset.pattern.permute.xlu0 0
    %187 = vperm.xlu0 %186, %v34
    %v188 = vpop.permute.xlu0 %187
    %191 = vset.pattern.permute.xlu0 0
    %192 = vperm.xlu0 %191, %v35
    %v193 = vpop.permute.xlu0 %192
    %196 = vset.pattern.permute.xlu0 0
    %197 = vperm.xlu0 %196, %v36
    %v198 = vpop.permute.xlu0 %197
    %201 = vset.pattern.permute.xlu0 0
    %202 = vperm.xlu0 %201, %v37
    %v203 = vpop.permute.xlu0 %202
    %206 = vset.pattern.permute.xlu0 0
    %207 = vperm.xlu0 %206, %v38
    %v208 = vpop.permute.xlu0 %207
    %211 = vset.pattern.permute.xlu0 0
    %212 = vperm.xlu0 %211, %v39
    %v213 = vpop.permute.xlu0 %212
    %v215 = vlaneseq
    %v216 = vshrl.u32 %v215, 7
    %v217 = vsub.s32 0, %v216
    %v218 = vrot.slane %v58, %v217
    %v219 = vmul.f32 %v178, %v218
    %v220 = vmul.f32 %v183, %v218
    %v221 = vmul.f32 %v188, %v218
    %v222 = vmul.f32 %v193, %v218
    %v223 = vmul.f32 %v198, %v218
    %v224 = vmul.f32 %v203, %v218
    %v225 = vmul.f32 %v208, %v218
    %v226 = vmul.f32 %v213, %v218
    %v227 = vadd.f32 %v219, 0.0
    %v228 = vadd.f32 %v220, 0.0
    %v229 = vadd.f32 %v221, 0.0
    %v230 = vadd.f32 %v222, 0.0
    %v231 = vadd.f32 %v223, 0.0
    %v232 = vadd.f32 %v224, 0.0
    %v233 = vadd.f32 %v225, 0.0
    %v234 = vadd.f32 %v226, 0.0
    %v235 = vlaneseq
    %v236 = vshrl.u32 %v235, 7
    %v237 = vsub.s32 0, %v236
    %v238 = vrot.slane %v56, %v237
    %v239 = vmul.f32 %v178, %v238
    %v240 = vadd.f32 %v239, 0.0
    %241 = vset.pattern.permute.xlu0 1
    %242 = vperm.xlu0 %241, %v40
    %v243 = vpop.permute.xlu0 %242
    %245 = vset.pattern.permute.xlu0 1
    %246 = vperm.xlu0 %245, %v41
    %v247 = vpop.permute.xlu0 %246
    %249 = vset.pattern.permute.xlu0 1
    %250 = vperm.xlu0 %249, %v42
    %v251 = vpop.permute.xlu0 %250
    %253 = vset.pattern.permute.xlu0 1
    %254 = vperm.xlu0 %253, %v43
    %v255 = vpop.permute.xlu0 %254
    %257 = vset.pattern.permute.xlu0 1
    %258 = vperm.xlu0 %257, %v44
    %v259 = vpop.permute.xlu0 %258
    %261 = vset.pattern.permute.xlu0 1
    %262 = vperm.xlu0 %261, %v45
    %v263 = vpop.permute.xlu0 %262
    %265 = vset.pattern.permute.xlu0 1
    %266 = vperm.xlu0 %265, %v46
    %v267 = vpop.permute.xlu0 %266
    %269 = vset.pattern.permute.xlu0 1
    %270 = vperm.xlu0 %269, %v47
    %v271 = vpop.permute.xlu0 %270
    %273 = vset.pattern.permute.xlu0 1
    %274 = vperm.xlu0 %273, %v48
    %v275 = vpop.permute.xlu0 %274
    %277 = vset.pattern.permute.xlu0 1
    %278 = vperm.xlu0 %277, %v49
    %v279 = vpop.permute.xlu0 %278
    %281 = vset.pattern.permute.xlu0 1
    %282 = vperm.xlu0 %281, %v50
    %v283 = vpop.permute.xlu0 %282
    %285 = vset.pattern.permute.xlu0 1
    %286 = vperm.xlu0 %285, %v51
    %v287 = vpop.permute.xlu0 %286
    %289 = vset.pattern.permute.xlu0 1
    %290 = vperm.xlu0 %289, %v52
    %v291 = vpop.permute.xlu0 %290
    %293 = vset.pattern.permute.xlu0 1
    %294 = vperm.xlu0 %293, %v53
    %v295 = vpop.permute.xlu0 %294
    %297 = vset.pattern.permute.xlu0 1
    %298 = vperm.xlu0 %297, %v54
    %v299 = vpop.permute.xlu0 %298
    %301 = vset.pattern.permute.xlu0 1
    %302 = vperm.xlu0 %301, %v55
    %v303 = vpop.permute.xlu0 %302
    %v305 = vlaneseq
    %v306 = vshrl.u32 %v305, 7
    %v307 = vsub.s32 1, %v306
    %v308 = vrot.slane %v57, %v307
    %v309 = vmul.f32 %v243, %v308
    %v310 = vmul.f32 %v247, %v308
    %v311 = vmul.f32 %v251, %v308
    %v312 = vmul.f32 %v255, %v308
    %v313 = vmul.f32 %v259, %v308
    %v314 = vmul.f32 %v263, %v308
    %v315 = vmul.f32 %v267, %v308
    %v316 = vmul.f32 %v271, %v308
    %v317 = vmul.f32 %v275, %v308
    %v318 = vmul.f32 %v279, %v308
    %v319 = vmul.f32 %v283, %v308
    %v320 = vmul.f32 %v287, %v308
    %v321 = vmul.f32 %v291, %v308
    %v322 = vmul.f32 %v295, %v308
    %v323 = vmul.f32 %v299, %v308
    %v324 = vmul.f32 %v303, %v308
    %v325 = vadd.f32 %v159, %v309
    %v326 = vadd.f32 %v160, %v310
    %v327 = vadd.f32 %v161, %v311
    %v328 = vadd.f32 %v162, %v312
    %v329 = vadd.f32 %v163, %v313
    %v330 = vadd.f32 %v164, %v314
    %v331 = vadd.f32 %v165, %v315
    %v332 = vadd.f32 %v166, %v316
    %v333 = vadd.f32 %v167, %v317
    %v334 = vadd.f32 %v168, %v318
    %v335 = vadd.f32 %v169, %v319
    %v336 = vadd.f32 %v170, %v320
    %v337 = vadd.f32 %v171, %v321
    %v338 = vadd.f32 %v172, %v322
    %v339 = vadd.f32 %v173, %v323
    %v340 = vadd.f32 %v174, %v324
    %341 = vset.pattern.permute.xlu0 1
    %342 = vperm.xlu0 %341, %v32
    %v343 = vpop.permute.xlu0 %342
    %345 = vset.pattern.permute.xlu0 1
    %346 = vperm.xlu0 %345, %v33
    %v347 = vpop.permute.xlu0 %346
    %349 = vset.pattern.permute.xlu0 1
    %350 = vperm.xlu0 %349, %v34
    %v351 = vpop.permute.xlu0 %350
    %353 = vset.pattern.permute.xlu0 1
    %354 = vperm.xlu0 %353, %v35
    %v355 = vpop.permute.xlu0 %354
    %357 = vset.pattern.permute.xlu0 1
    %358 = vperm.xlu0 %357, %v36
    %v359 = vpop.permute.xlu0 %358
    %361 = vset.pattern.permute.xlu0 1
    %362 = vperm.xlu0 %361, %v37
    %v363 = vpop.permute.xlu0 %362
    %365 = vset.pattern.permute.xlu0 1
    %366 = vperm.xlu0 %365, %v38
    %v367 = vpop.permute.xlu0 %366
    %369 = vset.pattern.permute.xlu0 1
    %370 = vperm.xlu0 %369, %v39
    %v371 = vpop.permute.xlu0 %370
    %v373 = vlaneseq
    %v374 = vshrl.u32 %v373, 7
    %v375 = vsub.s32 1, %v374
    %v376 = vrot.slane %v58, %v375
    %v377 = vmul.f32 %v343, %v376
    %v378 = vmul.f32 %v347, %v376
    %v379 = vmul.f32 %v351, %v376
    %v380 = vmul.f32 %v355, %v376
    %v381 = vmul.f32 %v359, %v376
    %v382 = vmul.f32 %v363, %v376
    %v383 = vmul.f32 %v367, %v376
    %v384 = vmul.f32 %v371, %v376
    %v385 = vadd.f32 %v227, %v377
    %v386 = vadd.f32 %v228, %v378
    %v387 = vadd.f32 %v229, %v379
    %v388 = vadd.f32 %v230, %v380
    %v389 = vadd.f32 %v231, %v381
    %v390 = vadd.f32 %v232, %v382
    %v391 = vadd.f32 %v233, %v383
    %v392 = vadd.f32 %v234, %v384
    %v393 = vlaneseq
    %v394 = vshrl.u32 %v393, 7
    %v395 = vsub.s32 1, %v394
    %v396 = vrot.slane %v56, %v395
    %v397 = vmul.f32 %v343, %v396
    %v398 = vadd.f32 %v240, %v397
    %399 = vset.pattern.permute.xlu0 2
    %400 = vperm.xlu0 %399, %v40
    %v401 = vpop.permute.xlu0 %400
    %403 = vset.pattern.permute.xlu0 2
    %404 = vperm.xlu0 %403, %v41
    %v405 = vpop.permute.xlu0 %404
    %407 = vset.pattern.permute.xlu0 2
    %408 = vperm.xlu0 %407, %v42
    %v409 = vpop.permute.xlu0 %408
    %411 = vset.pattern.permute.xlu0 2
    %412 = vperm.xlu0 %411, %v43
    %v413 = vpop.permute.xlu0 %412
    %415 = vset.pattern.permute.xlu0 2
    %416 = vperm.xlu0 %415, %v44
    %v417 = vpop.permute.xlu0 %416
    %419 = vset.pattern.permute.xlu0 2
    %420 = vperm.xlu0 %419, %v45
    %v421 = vpop.permute.xlu0 %420
    %423 = vset.pattern.permute.xlu0 2
    %424 = vperm.xlu0 %423, %v46
    %v425 = vpop.permute.xlu0 %424
    %427 = vset.pattern.permute.xlu0 2
    %428 = vperm.xlu0 %427, %v47
    %v429 = vpop.permute.xlu0 %428
    %431 = vset.pattern.permute.xlu0 2
    %432 = vperm.xlu0 %431, %v48
    %v433 = vpop.permute.xlu0 %432
    %435 = vset.pattern.permute.xlu0 2
    %436 = vperm.xlu0 %435, %v49
    %v437 = vpop.permute.xlu0 %436
    %439 = vset.pattern.permute.xlu0 2
    %440 = vperm.xlu0 %439, %v50
    %v441 = vpop.permute.xlu0 %440
    %443 = vset.pattern.permute.xlu0 2
    %444 = vperm.xlu0 %443, %v51
    %v445 = vpop.permute.xlu0 %444
    %447 = vset.pattern.permute.xlu0 2
    %448 = vperm.xlu0 %447, %v52
    %v449 = vpop.permute.xlu0 %448
    %451 = vset.pattern.permute.xlu0 2
    %452 = vperm.xlu0 %451, %v53
    %v453 = vpop.permute.xlu0 %452
    %455 = vset.pattern.permute.xlu0 2
    %456 = vperm.xlu0 %455, %v54
    %v457 = vpop.permute.xlu0 %456
    %459 = vset.pattern.permute.xlu0 2
    %460 = vperm.xlu0 %459, %v55
    %v461 = vpop.permute.xlu0 %460
    %v463 = vlaneseq
    %v464 = vshrl.u32 %v463, 7
    %v465 = vsub.s32 2, %v464
    %v466 = vrot.slane %v57, %v465
    %v467 = vmul.f32 %v401, %v466
    %v468 = vmul.f32 %v405, %v466
    %v469 = vmul.f32 %v409, %v466
    %v470 = vmul.f32 %v413, %v466
    %v471 = vmul.f32 %v417, %v466
    %v472 = vmul.f32 %v421, %v466
    %v473 = vmul.f32 %v425, %v466
    %v474 = vmul.f32 %v429, %v466
    %v475 = vmul.f32 %v433, %v466
    %v476 = vmul.f32 %v437, %v466
    %v477 = vmul.f32 %v441, %v466
    %v478 = vmul.f32 %v445, %v466
    %v479 = vmul.f32 %v449, %v466
    %v480 = vmul.f32 %v453, %v466
    %v481 = vmul.f32 %v457, %v466
    %v482 = vmul.f32 %v461, %v466
    %v483 = vadd.f32 %v325, %v467
    %v484 = vadd.f32 %v326, %v468
    %v485 = vadd.f32 %v327, %v469
    %v486 = vadd.f32 %v328, %v470
    %v487 = vadd.f32 %v329, %v471
    %v488 = vadd.f32 %v330, %v472
    %v489 = vadd.f32 %v331, %v473
    %v490 = vadd.f32 %v332, %v474
    %v491 = vadd.f32 %v333, %v475
    %v492 = vadd.f32 %v334, %v476
    %v493 = vadd.f32 %v335, %v477
    %v494 = vadd.f32 %v336, %v478
    %v495 = vadd.f32 %v337, %v479
    %v496 = vadd.f32 %v338, %v480
    %v497 = vadd.f32 %v339, %v481
    %v498 = vadd.f32 %v340, %v482
    %499 = vset.pattern.permute.xlu0 2
    %500 = vperm.xlu0 %499, %v32
    %v501 = vpop.permute.xlu0 %500
    %503 = vset.pattern.permute.xlu0 2
    %504 = vperm.xlu0 %503, %v33
    %v505 = vpop.permute.xlu0 %504
    %507 = vset.pattern.permute.xlu0 2
    %508 = vperm.xlu0 %507, %v34
    %v509 = vpop.permute.xlu0 %508
    %511 = vset.pattern.permute.xlu0 2
    %512 = vperm.xlu0 %511, %v35
    %v513 = vpop.permute.xlu0 %512
    %515 = vset.pattern.permute.xlu0 2
    %516 = vperm.xlu0 %515, %v36
    %v517 = vpop.permute.xlu0 %516
    %519 = vset.pattern.permute.xlu0 2
    %520 = vperm.xlu0 %519, %v37
    %v521 = vpop.permute.xlu0 %520
    %523 = vset.pattern.permute.xlu0 2
    %524 = vperm.xlu0 %523, %v38
    %v525 = vpop.permute.xlu0 %524
    %527 = vset.pattern.permute.xlu0 2
    %528 = vperm.xlu0 %527, %v39
    %v529 = vpop.permute.xlu0 %528
    %v531 = vlaneseq
    %v532 = vshrl.u32 %v531, 7
    %v533 = vsub.s32 2, %v532
    %v534 = vrot.slane %v58, %v533
    %v535 = vmul.f32 %v501, %v534
    %v536 = vmul.f32 %v505, %v534
    %v537 = vmul.f32 %v509, %v534
    %v538 = vmul.f32 %v513, %v534
    %v539 = vmul.f32 %v517, %v534
    %v540 = vmul.f32 %v521, %v534
    %v541 = vmul.f32 %v525, %v534
    %v542 = vmul.f32 %v529, %v534
    %v543 = vadd.f32 %v385, %v535
    %v544 = vadd.f32 %v386, %v536
    %v545 = vadd.f32 %v387, %v537
    %v546 = vadd.f32 %v388, %v538
    %v547 = vadd.f32 %v389, %v539
    %v548 = vadd.f32 %v390, %v540
    %v549 = vadd.f32 %v391, %v541
    %v550 = vadd.f32 %v392, %v542
    %v551 = vlaneseq
    %v552 = vshrl.u32 %v551, 7
    %v553 = vsub.s32 2, %v552
    %v554 = vrot.slane %v56, %v553
    %v555 = vmul.f32 %v501, %v554
    %v556 = vadd.f32 %v398, %v555
    %557 = vset.pattern.permute.xlu0 3
    %558 = vperm.xlu0 %557, %v40
    %v559 = vpop.permute.xlu0 %558
    %561 = vset.pattern.permute.xlu0 3
    %562 = vperm.xlu0 %561, %v41
    %v563 = vpop.permute.xlu0 %562
    %565 = vset.pattern.permute.xlu0 3
    %566 = vperm.xlu0 %565, %v42
    %v567 = vpop.permute.xlu0 %566
    %569 = vset.pattern.permute.xlu0 3
    %570 = vperm.xlu0 %569, %v43
    %v571 = vpop.permute.xlu0 %570
    %573 = vset.pattern.permute.xlu0 3
    %574 = vperm.xlu0 %573, %v44
    %v575 = vpop.permute.xlu0 %574
    %577 = vset.pattern.permute.xlu0 3
    %578 = vperm.xlu0 %577, %v45
    %v579 = vpop.permute.xlu0 %578
    %581 = vset.pattern.permute.xlu0 3
    %582 = vperm.xlu0 %581, %v46
    %v583 = vpop.permute.xlu0 %582
    %585 = vset.pattern.permute.xlu0 3
    %586 = vperm.xlu0 %585, %v47
    %v587 = vpop.permute.xlu0 %586
    %589 = vset.pattern.permute.xlu0 3
    %590 = vperm.xlu0 %589, %v48
    %v591 = vpop.permute.xlu0 %590
    %593 = vset.pattern.permute.xlu0 3
    %594 = vperm.xlu0 %593, %v49
    %v595 = vpop.permute.xlu0 %594
    %597 = vset.pattern.permute.xlu0 3
    %598 = vperm.xlu0 %597, %v50
    %v599 = vpop.permute.xlu0 %598
    %601 = vset.pattern.permute.xlu0 3
    %602 = vperm.xlu0 %601, %v51
    %v603 = vpop.permute.xlu0 %602
    %605 = vset.pattern.permute.xlu0 3
    %606 = vperm.xlu0 %605, %v52
    %v607 = vpop.permute.xlu0 %606
    %609 = vset.pattern.permute.xlu0 3
    %610 = vperm.xlu0 %609, %v53
    %v611 = vpop.permute.xlu0 %610
    %613 = vset.pattern.permute.xlu0 3
    %614 = vperm.xlu0 %613, %v54
    %v615 = vpop.permute.xlu0 %614
    %617 = vset.pattern.permute.xlu0 3
    %618 = vperm.xlu0 %617, %v55
    %v619 = vpop.permute.xlu0 %618
    %v621 = vlaneseq
    %v622 = vshrl.u32 %v621, 7
    %v623 = vsub.s32 3, %v622
    %v624 = vrot.slane %v57, %v623
    %v625 = vmul.f32 %v559, %v624
    %v626 = vmul.f32 %v563, %v624
    %v627 = vmul.f32 %v567, %v624
    %v628 = vmul.f32 %v571, %v624
    %v629 = vmul.f32 %v575, %v624
    %v630 = vmul.f32 %v579, %v624
    %v631 = vmul.f32 %v583, %v624
    %v632 = vmul.f32 %v587, %v624
    %v633 = vmul.f32 %v591, %v624
    %v634 = vmul.f32 %v595, %v624
    %v635 = vmul.f32 %v599, %v624
    %v636 = vmul.f32 %v603, %v624
    %v637 = vmul.f32 %v607, %v624
    %v638 = vmul.f32 %v611, %v624
    %v639 = vmul.f32 %v615, %v624
    %v640 = vmul.f32 %v619, %v624
    %v641 = vadd.f32 %v483, %v625
    %v642 = vadd.f32 %v484, %v626
    %v643 = vadd.f32 %v485, %v627
    %v644 = vadd.f32 %v486, %v628
    %v645 = vadd.f32 %v487, %v629
    %v646 = vadd.f32 %v488, %v630
    %v647 = vadd.f32 %v489, %v631
    %v648 = vadd.f32 %v490, %v632
    %v649 = vadd.f32 %v491, %v633
    %v650 = vadd.f32 %v492, %v634
    %v651 = vadd.f32 %v493, %v635
    %v652 = vadd.f32 %v494, %v636
    %v653 = vadd.f32 %v495, %v637
    %v654 = vadd.f32 %v496, %v638
    %v655 = vadd.f32 %v497, %v639
    %v656 = vadd.f32 %v498, %v640
    %657 = vset.pattern.permute.xlu0 3
    %658 = vperm.xlu0 %657, %v32
    %v659 = vpop.permute.xlu0 %658
    %661 = vset.pattern.permute.xlu0 3
    %662 = vperm.xlu0 %661, %v33
    %v663 = vpop.permute.xlu0 %662
    %665 = vset.pattern.permute.xlu0 3
    %666 = vperm.xlu0 %665, %v34
    %v667 = vpop.permute.xlu0 %666
    %669 = vset.pattern.permute.xlu0 3
    %670 = vperm.xlu0 %669, %v35
    %v671 = vpop.permute.xlu0 %670
    %673 = vset.pattern.permute.xlu0 3
    %674 = vperm.xlu0 %673, %v36
    %v675 = vpop.permute.xlu0 %674
    %677 = vset.pattern.permute.xlu0 3
    %678 = vperm.xlu0 %677, %v37
    %v679 = vpop.permute.xlu0 %678
    %681 = vset.pattern.permute.xlu0 3
    %682 = vperm.xlu0 %681, %v38
    %v683 = vpop.permute.xlu0 %682
    %685 = vset.pattern.permute.xlu0 3
    %686 = vperm.xlu0 %685, %v39
    %v687 = vpop.permute.xlu0 %686
    %v689 = vlaneseq
    %v690 = vshrl.u32 %v689, 7
    %v691 = vsub.s32 3, %v690
    %v692 = vrot.slane %v58, %v691
    %v693 = vmul.f32 %v659, %v692
    %v694 = vmul.f32 %v663, %v692
    %v695 = vmul.f32 %v667, %v692
    %v696 = vmul.f32 %v671, %v692
    %v697 = vmul.f32 %v675, %v692
    %v698 = vmul.f32 %v679, %v692
    %v699 = vmul.f32 %v683, %v692
    %v700 = vmul.f32 %v687, %v692
    %v701 = vadd.f32 %v543, %v693
    %v702 = vadd.f32 %v544, %v694
    %v703 = vadd.f32 %v545, %v695
    %v704 = vadd.f32 %v546, %v696
    %v705 = vadd.f32 %v547, %v697
    %v706 = vadd.f32 %v548, %v698
    %v707 = vadd.f32 %v549, %v699
    %v708 = vadd.f32 %v550, %v700
    %v709 = vlaneseq
    %v710 = vshrl.u32 %v709, 7
    %v711 = vsub.s32 3, %v710
    %v712 = vrot.slane %v56, %v711
    %v713 = vmul.f32 %v659, %v712
    %v714 = vadd.f32 %v556, %v713
    %v724 = vunpack.c.l.s4 1966171168
    %v725 = vunpack.c.0.s8 %v724
    %v726 = vlaneseq
    %v727 = vshrl.u32 %v726, 7
    %v728 = vsub.s32 %v725, %v727
    %v729 = vrot.slane %v701, %v728
    %v730 = vcombine.high %v729, %v729
    %v732 = vunpack.c.l.s4 1966171168
    %v733 = vunpack.c.0.s8 %v732
    %v734 = vlaneseq
    %v735 = vshrl.u32 %v734, 7
    %v736 = vsub.s32 %v733, %v735
    %v737 = vrot.slane %v729, %v736
    %v739 = vunpack.c.l.s4 1966171168
    %v740 = vunpack.c.0.s8 %v739
    %v741 = vlaneseq
    %v742 = vshrl.u32 %v741, 7
    %v743 = vsub.s32 %v740, %v742
    %v744 = vrot.slane %v730, %v743
    %v746 = vunpack.c.l.s4 1966171168
    %v747 = vunpack.c.0.s8 %v746
    %v748 = vlaneseq
    %v749 = vshrl.u32 %v748, 7
    %v750 = vsub.s32 %v747, %v749
    %v751 = vrot.slane %v702, %v750
    %v752 = vcombine.high %v751, %v751
    %v754 = vunpack.c.l.s4 1966171168
    %v755 = vunpack.c.0.s8 %v754
    %v756 = vlaneseq
    %v757 = vshrl.u32 %v756, 7
    %v758 = vsub.s32 %v755, %v757
    %v759 = vrot.slane %v751, %v758
    %v761 = vunpack.c.l.s4 1966171168
    %v762 = vunpack.c.0.s8 %v761
    %v763 = vlaneseq
    %v764 = vshrl.u32 %v763, 7
    %v765 = vsub.s32 %v762, %v764
    %v766 = vrot.slane %v752, %v765
    %v768 = vunpack.c.l.s4 1966171168
    %v769 = vunpack.c.0.s8 %v768
    %v770 = vlaneseq
    %v771 = vshrl.u32 %v770, 7
    %v772 = vsub.s32 %v769, %v771
    %v773 = vrot.slane %v703, %v772
    %v774 = vcombine.high %v773, %v773
    %v776 = vunpack.c.l.s4 1966171168
    %v777 = vunpack.c.0.s8 %v776
    %v778 = vlaneseq
    %v779 = vshrl.u32 %v778, 7
    %v780 = vsub.s32 %v777, %v779
    %v781 = vrot.slane %v773, %v780
    %v783 = vunpack.c.l.s4 1966171168
    %v784 = vunpack.c.0.s8 %v783
    %v785 = vlaneseq
    %v786 = vshrl.u32 %v785, 7
    %v787 = vsub.s32 %v784, %v786
    %v788 = vrot.slane %v774, %v787
    %v790 = vunpack.c.l.s4 1966171168
    %v791 = vunpack.c.0.s8 %v790
    %v792 = vlaneseq
    %v793 = vshrl.u32 %v792, 7
    %v794 = vsub.s32 %v791, %v793
    %v795 = vrot.slane %v704, %v794
    %v796 = vcombine.high %v795, %v795
    %v798 = vunpack.c.l.s4 1966171168
    %v799 = vunpack.c.0.s8 %v798
    %v800 = vlaneseq
    %v801 = vshrl.u32 %v800, 7
    %v802 = vsub.s32 %v799, %v801
    %v803 = vrot.slane %v795, %v802
    %v805 = vunpack.c.l.s4 1966171168
    %v806 = vunpack.c.0.s8 %v805
    %v807 = vlaneseq
    %v808 = vshrl.u32 %v807, 7
    %v809 = vsub.s32 %v806, %v808
    %v810 = vrot.slane %v796, %v809
    %v812 = vunpack.c.l.s4 1966171168
    %v813 = vunpack.c.0.s8 %v812
    %v814 = vlaneseq
    %v815 = vshrl.u32 %v814, 7
    %v816 = vsub.s32 %v813, %v815
    %v817 = vrot.slane %v705, %v816
    %v818 = vcombine.high %v817, %v817
    %v820 = vunpack.c.l.s4 1966171168
    %v821 = vunpack.c.0.s8 %v820
    %v822 = vlaneseq
    %v823 = vshrl.u32 %v822, 7
    %v824 = vsub.s32 %v821, %v823
    %v825 = vrot.slane %v817, %v824
    %v827 = vunpack.c.l.s4 1966171168
    %v828 = vunpack.c.0.s8 %v827
    %v829 = vlaneseq
    %v830 = vshrl.u32 %v829, 7
    %v831 = vsub.s32 %v828, %v830
    %v832 = vrot.slane %v818, %v831
    %v834 = vunpack.c.l.s4 1966171168
    %v835 = vunpack.c.0.s8 %v834
    %v836 = vlaneseq
    %v837 = vshrl.u32 %v836, 7
    %v838 = vsub.s32 %v835, %v837
    %v839 = vrot.slane %v706, %v838
    %v840 = vcombine.high %v839, %v839
    %v842 = vunpack.c.l.s4 1966171168
    %v843 = vunpack.c.0.s8 %v842
    %v844 = vlaneseq
    %v845 = vshrl.u32 %v844, 7
    %v846 = vsub.s32 %v843, %v845
    %v847 = vrot.slane %v839, %v846
    %v849 = vunpack.c.l.s4 1966171168
    %v850 = vunpack.c.0.s8 %v849
    %v851 = vlaneseq
    %v852 = vshrl.u32 %v851, 7
    %v853 = vsub.s32 %v850, %v852
    %v854 = vrot.slane %v840, %v853
    %v856 = vunpack.c.l.s4 1966171168
    %v857 = vunpack.c.0.s8 %v856
    %v858 = vlaneseq
    %v859 = vshrl.u32 %v858, 7
    %v860 = vsub.s32 %v857, %v859
    %v861 = vrot.slane %v707, %v860
    %v862 = vcombine.high %v861, %v861
    %v864 = vunpack.c.l.s4 1966171168
    %v865 = vunpack.c.0.s8 %v864
    %v866 = vlaneseq
    %v867 = vshrl.u32 %v866, 7
    %v868 = vsub.s32 %v865, %v867
    %v869 = vrot.slane %v861, %v868
    %v871 = vunpack.c.l.s4 1966171168
    %v872 = vunpack.c.0.s8 %v871
    %v873 = vlaneseq
    %v874 = vshrl.u32 %v873, 7
    %v875 = vsub.s32 %v872, %v874
    %v876 = vrot.slane %v862, %v875
    %v878 = vunpack.c.l.s4 1966171168
    %v879 = vunpack.c.0.s8 %v878
    %v880 = vlaneseq
    %v881 = vshrl.u32 %v880, 7
    %v882 = vsub.s32 %v879, %v881
    %v883 = vrot.slane %v708, %v882
    %v884 = vcombine.high %v883, %v883
    %v886 = vunpack.c.l.s4 1966171168
    %v887 = vunpack.c.0.s8 %v886
    %v888 = vlaneseq
    %v889 = vshrl.u32 %v888, 7
    %v890 = vsub.s32 %v887, %v889
    %v891 = vrot.slane %v883, %v890
    %v893 = vunpack.c.l.s4 1966171168
    %v894 = vunpack.c.0.s8 %v893
    %v895 = vlaneseq
    %v896 = vshrl.u32 %v895, 7
    %v897 = vsub.s32 %v894, %v896
    %v898 = vrot.slane %v884, %v897
    %v899 = vlaneseq
    %v900 = vshrl.u32 %v899, 7
    %v901 = vsub.s32 0, %v900
    %v902 = vrot.slane %v737, %v901
    %v903 = vlaneseq
    %v904 = vshrl.u32 %v903, 7
    %v905 = vsub.s32 0, %v904
    %v906 = vrot.slane %v744, %v905
    %v907 = vlaneseq
    %v908 = vshrl.u32 %v907, 7
    %v909 = vsub.s32 0, %v908
    %v910 = vrot.slane %v759, %v909
    %v911 = vlaneseq
    %v912 = vshrl.u32 %v911, 7
    %v913 = vsub.s32 0, %v912
    %v914 = vrot.slane %v766, %v913
    %v915 = vlaneseq
    %v916 = vshrl.u32 %v915, 7
    %v917 = vsub.s32 0, %v916
    %v918 = vrot.slane %v781, %v917
    %v919 = vlaneseq
    %v920 = vshrl.u32 %v919, 7
    %v921 = vsub.s32 0, %v920
    %v922 = vrot.slane %v788, %v921
    %v923 = vlaneseq
    %v924 = vshrl.u32 %v923, 7
    %v925 = vsub.s32 0, %v924
    %v926 = vrot.slane %v803, %v925
    %v927 = vlaneseq
    %v928 = vshrl.u32 %v927, 7
    %v929 = vsub.s32 0, %v928
    %v930 = vrot.slane %v810, %v929
    %v931 = vlaneseq
    %v932 = vshrl.u32 %v931, 7
    %v933 = vsub.s32 0, %v932
    %v934 = vrot.slane %v825, %v933
    %v935 = vlaneseq
    %v936 = vshrl.u32 %v935, 7
    %v937 = vsub.s32 0, %v936
    %v938 = vrot.slane %v832, %v937
    %v939 = vlaneseq
    %v940 = vshrl.u32 %v939, 7
    %v941 = vsub.s32 0, %v940
    %v942 = vrot.slane %v847, %v941
    %v943 = vlaneseq
    %v944 = vshrl.u32 %v943, 7
    %v945 = vsub.s32 0, %v944
    %v946 = vrot.slane %v854, %v945
    %v947 = vlaneseq
    %v948 = vshrl.u32 %v947, 7
    %v949 = vsub.s32 0, %v948
    %v950 = vrot.slane %v869, %v949
    %v951 = vlaneseq
    %v952 = vshrl.u32 %v951, 7
    %v953 = vsub.s32 0, %v952
    %v954 = vrot.slane %v876, %v953
    %v955 = vlaneseq
    %v956 = vshrl.u32 %v955, 7
    %v957 = vsub.s32 0, %v956
    %v958 = vrot.slane %v891, %v957
    %v959 = vlaneseq
    %v960 = vshrl.u32 %v959, 7
    %v961 = vsub.s32 0, %v960
    %v962 = vrot.slane %v898, %v961
    %v979 = vadd.f32 %v641, %v902
    %v980 = vadd.f32 %v642, %v906
    %v981 = vadd.f32 %v643, %v910
    %v982 = vadd.f32 %v644, %v914
    %v983 = vadd.f32 %v645, %v918
    %v984 = vadd.f32 %v646, %v922
    %v985 = vadd.f32 %v647, %v926
    %v986 = vadd.f32 %v648, %v930
    %v987 = vadd.f32 %v649, %v934
    %v988 = vadd.f32 %v650, %v938
    %v989 = vadd.f32 %v651, %v942
    %v990 = vadd.f32 %v652, %v946
    %v991 = vadd.f32 %v653, %v950
    %v992 = vadd.f32 %v654, %v954
    %v993 = vadd.f32 %v655, %v958
    %v994 = vadd.f32 %v656, %v962
    %vm995 = vcmask 31744
    %996 = vst.msk [vmem:[%s8] sm:$0xff] %vm995, %v979
    %997 = vst.msk [vmem:[%s8 + $0x8] sm:$0xff] %vm995, %v980
    %998 = vst.msk [vmem:[%s8 + $0x10] sm:$0xff] %vm995, %v981
    %999 = vst.msk [vmem:[%s8 + $0x18] sm:$0xff] %vm995, %v982
    %1000 = vst.msk [vmem:[%s8 + $0x20] sm:$0xff] %vm995, %v983
    %1001 = vst.msk [vmem:[%s8 + $0x28] sm:$0xff] %vm995, %v984
    %1002 = vst.msk [vmem:[%s8 + $0x30] sm:$0xff] %vm995, %v985
    %1003 = vst.msk [vmem:[%s8 + $0x38] sm:$0xff] %vm995, %v986
    %1004 = vst.msk [vmem:[%s8 + $0x40] sm:$0xff] %vm995, %v987
    %1005 = vst.msk [vmem:[%s8 + $0x48] sm:$0xff] %vm995, %v988
    %1006 = vst.msk [vmem:[%s8 + $0x50] sm:$0xff] %vm995, %v989
    %1007 = vst.msk [vmem:[%s8 + $0x58] sm:$0xff] %vm995, %v990
    %1008 = vst.msk [vmem:[%s8 + $0x60] sm:$0xff] %vm995, %v991
    %1009 = vst.msk [vmem:[%s8 + $0x68] sm:$0xff] %vm995, %v992
    %1010 = vst.msk [vmem:[%s8 + $0x70] sm:$0xff] %vm995, %v993
    %1011 = vst.msk [vmem:[%s8 + $0x78] sm:$0xff] %vm995, %v994
    %vm1012 = vcmask 25600
    %1013 = vst.msk [vmem:[#allocation2] sm:$0x3] %vm1012, %v714
    %v1014 = vlaneseq
    %v1015 = vshrl.u32 %v1014, 7
    %v1016 = vlaneseq
    %v1017 = vand.u32 %v1016, 127
    %vm1018 = vcmp.eq.s32.totalorder %v1015, %v1017
    %v1019 = vld [vmem:[%s5] sm:$0x1]
    %v1021 = vlaneseq
    %v1022 = vshrl.u32 %v1021, 7
    %v1023 = vsub.s32 0, %v1022
    %v1024 = vrot.slane %v1019, %v1023
    %v1026 = vsel %vm1018, %v1024, 0.0
    %v1027 = vld [vmem:[%s6] sm:$0x1]
    %v1029 = vlaneseq
    %v1030 = vshrl.u32 %v1029, 7
    %v1031 = vsub.s32 0, %v1030
    %v1032 = vrot.slane %v1027, %v1031
    %v1034 = vsel %vm1018, %v1032, 0.0
    %v1035 = vmax.f32 %v1026, 0.0
    %v1036 = vand.u32 2147483647, %v1026
    %v1037 = vsub.f32 0.0, %v1036
    %v1038 = vmul.f32 %v1037, 1.442695
    %v1039 = vpow.pop %v1038
    %v1040 = vadd.f32 %v1039, 1.0
    %v1041 = vlog2.pop %v1040
    %v1042 = vmul.f32 %v1041, 0.6931472
    %v1043 = vadd.f32 %v1035, %v1042
    %vm1044 = vcmask 27648
    %1045 = vst.msk [vmem:[#allocation4] sm:$0xf] %vm1044, %v1043
    %v1046 = vmax.f32 %v1034, 0.0
    %v1047 = vand.u32 2147483647, %v1034
    %v1048 = vsub.f32 0.0, %v1047
    %v1049 = vmul.f32 %v1048, 1.442695
    %v1050 = vpow.pop %v1049
    %v1051 = vadd.f32 %v1050, 1.0
    %v1052 = vlog2.pop %v1051
    %v1053 = vmul.f32 %v1052, 0.6931472
    %v1054 = vadd.f32 %v1046, %v1053
    %1055 = vst.msk [vmem:[#allocation6] sm:$0xf] %vm1044, %v1054
    // Predicated region
    $region30: #{tpu_custom_call.1} parent=1 // pred_check
      _
    $region31: #{tpu_custom_call.1} parent=1 // pred_check_branch
      %1057 = sbr.rel (0) target = $region33
    $region32: #{tpu_custom_call.1} parent=1 // pred_region
      %s1059 = ssub.s32 32, 32
      %1060 = vsyncadd [#allocation3], %s1059
      %s1062 = sshll.u32 [#allocation2], 4
      %s1063 = int_to_ptr.vmem [resolvable:$true] %s1062
      %1065 = dma.vmem_to_hbm [thread:$0]  %s1063, 32, %s7, [#allocation3]
    $region33: #{tpu_custom_call.1} parent=1 // pred_fallthru
      _
    // Predicated region
    $region34: #{tpu_custom_call.1} parent=1 // pred_check
      _
    $region35: #{tpu_custom_call.1} parent=1 // pred_check_branch
      %1067 = sbr.rel (0) target = $region37
    $region36: #{tpu_custom_call.1} parent=1 // pred_region
      _
    $region37: #{tpu_custom_call.1} parent=1 // pred_fallthru
      _
    // Predicated region
    $region38: #{tpu_custom_call.1} parent=1 // pred_check
      _
    $region39: #{tpu_custom_call.1} parent=1 // pred_check_branch
      %1069 = sbr.rel (0) target = $region41
    $region40: #{tpu_custom_call.1} parent=1 // pred_region
      %s1071 = ssub.s32 64, 64
      %1072 = vsyncadd [#allocation5], %s1071
      %s1074 = sshll.u32 [#allocation4], 4
      %s1075 = int_to_ptr.vmem [resolvable:$true] %s1074
      %1077 = dma.vmem_to_hbm [thread:$0]  %s1075, 64, %s9, [#allocation5]
    $region41: #{tpu_custom_call.1} parent=1 // pred_fallthru
      _
    // Predicated region
    $region42: #{tpu_custom_call.1} parent=1 // pred_check
      _
    $region43: #{tpu_custom_call.1} parent=1 // pred_check_branch
      %1079 = sbr.rel (0) target = $region45
    $region44: #{tpu_custom_call.1} parent=1 // pred_region
      %s1081 = ssub.s32 64, 64
      %1082 = vsyncadd [#allocation5], %s1081
      %s1084 = sshll.u32 [#allocation6], 4
      %s1085 = int_to_ptr.vmem [resolvable:$true] %s1084
      %1087 = dma.vmem_to_hbm [thread:$0]  %s1085, 64, %s10, [#allocation5]
    $region45: #{tpu_custom_call.1} parent=1 // pred_fallthru
      _
    // Predicated region
    $region46: #{tpu_custom_call.1} parent=1 // pred_check
      _
    $region47: #{tpu_custom_call.1} parent=1 // pred_check_branch
      %1089 = sbr.rel (0) target = $region49
    $region48: #{tpu_custom_call.1} parent=1 // pred_region
      %1090 = dma.done [#allocation3], 32
    $region49: #{tpu_custom_call.1} parent=1 // pred_fallthru
      _
    // Predicated region
    $region50: #{tpu_custom_call.1} parent=1 // pred_check
      _
    $region51: #{tpu_custom_call.1} parent=1 // pred_check_branch
      %1092 = sbr.rel (0) target = $region53
    $region52: #{tpu_custom_call.1} parent=1 // pred_region
      _
    $region53: #{tpu_custom_call.1} parent=1 // pred_fallthru
      _
    // Predicated region
    $region54: #{tpu_custom_call.1} parent=1 // pred_check
      _
    $region55: #{tpu_custom_call.1} parent=1 // pred_check_branch
      %1094 = sbr.rel (0) target = $region57
    $region56: #{tpu_custom_call.1} parent=1 // pred_region
      %1095 = dma.done [#allocation5], 64
    $region57: #{tpu_custom_call.1} parent=1 // pred_fallthru
      _
    // Predicated region
    $region58: #{tpu_custom_call.1} parent=1 // pred_check
      _
    $region59: #{tpu_custom_call.1} parent=1 // pred_check_branch
      %1097 = sbr.rel (0) target = $region61
    $region60: #{tpu_custom_call.1} parent=1 // pred_region
      %1098 = dma.done [#allocation5], 64
    $region61: #{tpu_custom_call.1} parent=1 // pred_fallthru
      _
    %1099 = vsyncpa [#allocation3], 1
    %1100 = vsyncpa [#allocation5], 1

</llo_original>
